<compile_context>
chip_gen: v6e
topology: v6e:2x2x1
jax: 0.10.0
libtpu: 0.0.40
codegen_flags: <defaults>
</compile_context>

<pallas_src>
import functools

import jax
import jax.numpy as jnp
from jax.experimental import pallas as pl
from jax.experimental.pallas import tpu as pltpu


def _round_up(x: int, m: int) -> int:
    return ((x + m - 1) // m) * m


def _choose_tile_n(n: int, c: int, itemsize: int) -> int:
    """Pick a row-tile size: ~1 MiB pred blocks, multiple of 8, capped by N."""
    target_block_bytes = 1 << 20  # 1 MiB per pred block (x2 for double buffer)
    tile = target_block_bytes // max(1, c * itemsize)
    tile = max(8, min(32768, (tile // 8) * 8))
    tile = min(tile, _round_up(n, 8))
    return tile


def _ce_loss_kernel(pred_ref, tgt_ref, out_ref, *, n_total, tile_n):
    # pred_ref: (TILE_N, C) logits block in VMEM (native dtype, upcast here)
    # tgt_ref:  (TILE_N, 1) int32 class indices block in VMEM
    # out_ref:  (1,) float32 scalar, resident in SMEM across the whole grid
    pid = pl.program_id(0)
    num = pl.num_programs(0)

    logits = pred_ref[...].astype(jnp.float32)          # (TILE_N, C)
    tgt = tgt_ref[...]                                   # (TILE_N, 1) int32

    tn, c = logits.shape

    # Numerically stable log-sum-exp along the class (lane) axis.
    m = jnp.max(logits, axis=-1, keepdims=True)          # (TILE_N, 1)
    shifted = logits - m                                  # (TILE_N, C)
    sumexp = jnp.sum(jnp.exp(shifted), axis=-1, keepdims=True)
    log_sumexp = jnp.log(sumexp)                          # (TILE_N, 1)

    # Target logit gather fused on `shifted` (one-hot mask, VPU-friendly):
    #   per_sample = (log_sumexp + m) - logits[target]
    #              =  log_sumexp      - shifted[target]
    col_ids = jax.lax.broadcasted_iota(jnp.int32, (tn, c), dimension=1)
    onehot = col_ids == tgt                               # (TILE_N, C) bool
    shifted_tgt = jnp.sum(jnp.where(onehot, shifted, 0.0),
                          axis=-1, keepdims=True)         # (TILE_N, 1)

    per_sample = log_sumexp - shifted_tgt                 # (TILE_N, 1)

    # Mask rows past the true N (last, possibly partial / padded tile).
    row_ids = jax.lax.broadcasted_iota(jnp.int32, (tn, 1), dimension=0)
    valid = (row_ids + pid * tile_n) < n_total
    tile_sum = jnp.sum(jnp.where(valid, per_sample, 0.0))

    @pl.when(pid == 0)
    def _():
        out_ref[0] = 0.0

    out_ref[0] += tile_sum

    @pl.when(pid == num - 1)
    def _():
        # Divide by the GLOBAL sample count (mean reduction).
        out_ref[0] = out_ref[0] * jnp.float32(1.0 / n_total)


def larvoxel_class_loss(pred: jax.Array, target: jax.Array, *,
                        tile_n: int | None = None) -> jax.Array:
    """Pallas equivalent of LArVoxelClassLoss().forward(pred, target).

    pred:   (N, C) float logits (f32 or bf16 -- passed in native dtype)
    target: (N,)   integer class indices in [0, C)
    returns scalar float32 loss (mean cross entropy)
    """
    n, c = pred.shape
    tgt2d = target.astype(jnp.int32).reshape(n, 1)

    if tile_n is None:
        tile_n = _choose_tile_n(n, c, jnp.dtype(pred.dtype).itemsize)
    tile_n = max(8, _round_up(tile_n, 8))

    grid = (pl.cdiv(n, tile_n),)
    kernel = functools.partial(_ce_loss_kernel, n_total=n, tile_n=tile_n)

    out = pl.pallas_call(
        kernel,
        out_shape=jax.ShapeDtypeStruct((1,), jnp.float32),
        grid_spec=pltpu.PrefetchScalarGridSpec(
            num_scalar_prefetch=0,
            grid=grid,
            in_specs=[
                pl.BlockSpec((tile_n, c), lambda i: (i, 0)),  # pred tile
                pl.BlockSpec((tile_n, 1), lambda i: (i, 0)),  # target tile
            ],
            out_specs=pl.BlockSpec(memory_space=pltpu.SMEM),  # resident scalar
        ),
        compiler_params=pltpu.CompilerParams(
            dimension_semantics=("arbitrary",),  # reduction axis (accumulator)
        ),
    )(pred, tgt2d)
    return out[0]


def _ref_ce(pred: jax.Array, target: jax.Array) -> jax.Array:
    """Pure-JAX reference: torch.nn.CrossEntropyLoss (mean) semantics."""
    logits = pred.astype(jnp.float32)
    lse = jax.nn.logsumexp(logits, axis=-1)
    tgt_logit = jnp.take_along_axis(
        logits, target[:, None].astype(jnp.int32), axis=-1)[:, 0]
    return jnp.mean(lse - tgt_logit)


if __name__ == "__main__":
    key = jax.random.PRNGKey(0)
    k_pred, k_tgt = jax.random.split(key)

    # Small shapes consistent with the module: 21 voxels (not a tile multiple,
    # exercises the masked partial tile), 16 classes.  Force a small tile so
    # the demo runs a multi-step grid with cross-step accumulation.
    N, C = 21, 16
    pred = jax.random.normal(k_pred, (N, C), dtype=jnp.float32)
    target = jax.random.randint(k_tgt, (N,), 0, C, dtype=jnp.int32)

    loss = larvoxel_class_loss(pred, target, tile_n=8)
    jax.block_until_ready(loss)
    ref = _ref_ce(pred, target)
    assert jnp.allclose(loss, ref, atol=1e-5, rtol=1e-5), (loss, ref)

    # bf16 logits path: native-dtype HBM read, per-tile f32 upcast in-kernel.
    pred_bf16 = pred.astype(jnp.bfloat16)
    loss_bf16 = larvoxel_class_loss(pred_bf16, target, tile_n=8)
    jax.block_until_ready(loss_bf16)
    ref_bf16 = _ref_ce(pred_bf16, target)
    assert jnp.allclose(loss_bf16, ref_bf16, atol=1e-3, rtol=1e-3), (
        loss_bf16, ref_bf16)

    print("KERNEL_OK")
</pallas_src>

<mosaic_0001>
module attributes {stable_mosaic.version = 11 : i64} {
  func.func @_ce_loss_kernel(%arg0: i32, %arg1: memref<8x16xf32, #tpu.memory_space<vmem>>, %arg2: memref<8x1xi32, #tpu.memory_space<vmem>>, %arg3: memref<1xf32, #tpu.memory_space<smem>>) attributes {dimension_semantics = [#tpu.dimension_semantics<arbitrary>], iteration_bounds = array<i64: 3>, scalar_prefetch = 0 : i64, scratch_operands = 0 : i64, tpu.core_type = #tpu.core_type<tc>, window_params = [{transform_indices = @transform_0, window_bounds = array<i64: 8, 16>}, {transform_indices = @transform_1, window_bounds = array<i64: 8, 1>}, {transform_indices = @transform_2, window_bounds = array<i64: 1>}]} {
    %c0 = arith.constant 0 : index
    %c0_0 = arith.constant 0 : index
    %0 = vector.load %arg1[%c0, %c0_0] : memref<8x16xf32, #tpu.memory_space<vmem>>, vector<8x16xf32>
    %c0_1 = arith.constant 0 : index
    %c0_2 = arith.constant 0 : index
    %1 = vector.load %arg2[%c0_1, %c0_2] : memref<8x1xi32, #tpu.memory_space<vmem>>, vector<8x1xi32>
    %cst = arith.constant dense<0xFF800000> : vector<8xf32>
    %2 = vector.multi_reduction <maximumf>, %0, %cst [1] : vector<8x16xf32> to vector<8xf32>
    %3 = vector.shape_cast %2 : vector<8xf32> to vector<8x1xf32>
    %4 = vector.broadcast %3 : vector<8x1xf32> to vector<8x16xf32>
    %5 = arith.subf %0, %4 : vector<8x16xf32>
    %6 = math.exp %5 : vector<8x16xf32>
    %cst_3 = arith.constant dense<0.000000e+00> : vector<8xf32>
    %7 = vector.multi_reduction <add>, %6, %cst_3 [1] : vector<8x16xf32> to vector<8xf32>
    %8 = vector.shape_cast %7 : vector<8xf32> to vector<8x1xf32>
    %9 = math.log %8 : vector<8x1xf32>
    %10 = tpu.iota {dimensions = array<i32: 1>} : vector<8x16xi32>
    %11 = vector.broadcast %1 : vector<8x1xi32> to vector<8x16xi32>
    %12 = arith.cmpi eq, %10, %11 : vector<8x16xi32>
    %cst_4 = arith.constant 0.000000e+00 : f32
    %13 = vector.broadcast %cst_4 : f32 to vector<8x16xf32>
    %14 = arith.select %12, %5, %13 : vector<8x16xi1>, vector<8x16xf32>
    %cst_5 = arith.constant dense<0.000000e+00> : vector<8xf32>
    %15 = vector.multi_reduction <add>, %14, %cst_5 [1] : vector<8x16xf32> to vector<8xf32>
    %16 = vector.shape_cast %15 : vector<8xf32> to vector<8x1xf32>
    %17 = arith.subf %9, %16 : vector<8x1xf32>
    %18 = tpu.iota {dimensions = array<i32: 0>} : vector<8x1xi32>
    %c8_i32 = arith.constant 8 : i32
    %19 = arith.muli %arg0, %c8_i32 : i32
    %20 = vector.broadcast %19 : i32 to vector<8x1xi32>
    %21 = arith.addi %18, %20 : vector<8x1xi32>
    %c21_i32 = arith.constant 21 : i32
    %22 = vector.broadcast %c21_i32 : i32 to vector<8x1xi32>
    %23 = arith.cmpi slt, %21, %22 : vector<8x1xi32>
    %cst_6 = arith.constant 0.000000e+00 : f32
    %24 = vector.broadcast %cst_6 : f32 to vector<8x1xf32>
    %25 = arith.select %23, %17, %24 : vector<8x1xi1>, vector<8x1xf32>
    %26 = vector.shape_cast %25 : vector<8x1xf32> to vector<1x8x1xf32>
    %cst_7 = arith.constant dense<0.000000e+00> : vector<1xf32>
    %27 = vector.multi_reduction <add>, %26, %cst_7 [1, 2] : vector<1x8x1xf32> to vector<1xf32>
    %28 = vector.shape_cast %27 : vector<1xf32> to vector<1x1x1xf32>
    %29 = vector.extract %28[0, 0, 0] : f32 from vector<1x1x1xf32>
    %c0_i32 = arith.constant 0 : i32
    %30 = arith.cmpi eq, %arg0, %c0_i32 : i32
    %31 = arith.extui %30 : i1 to i32
    %c0_i32_8 = arith.constant 0 : i32
    %32 = arith.cmpi ne, %31, %c0_i32_8 : i32
    scf.if %32 {
      %cst_12 = arith.constant 0.000000e+00 : f32
      %c0_13 = arith.constant 0 : index
      %39 = memref.load %arg3[%c0_13] : memref<1xf32, #tpu.memory_space<smem>>
      memref.store %cst_12, %arg3[%c0_13] : memref<1xf32, #tpu.memory_space<smem>>
    } else {
    }
    %c0_9 = arith.constant 0 : index
    %33 = memref.load %arg3[%c0_9] : memref<1xf32, #tpu.memory_space<smem>>
    %34 = arith.addf %33, %29 : f32
    %c0_10 = arith.constant 0 : index
    %35 = memref.load %arg3[%c0_10] : memref<1xf32, #tpu.memory_space<smem>>
    memref.store %34, %arg3[%c0_10] : memref<1xf32, #tpu.memory_space<smem>>
    %c2_i32 = arith.constant 2 : i32
    %36 = arith.cmpi eq, %arg0, %c2_i32 : i32
    %37 = arith.extui %36 : i1 to i32
    %c0_i32_11 = arith.constant 0 : i32
    %38 = arith.cmpi ne, %37, %c0_i32_11 : i32
    scf.if %38 {
      %c0_12 = arith.constant 0 : index
      %39 = memref.load %arg3[%c0_12] : memref<1xf32, #tpu.memory_space<smem>>
      %cst_13 = arith.constant 0.0476190485 : f32
      %40 = arith.mulf %39, %cst_13 : f32
      %c0_14 = arith.constant 0 : index
      %41 = memref.load %arg3[%c0_14] : memref<1xf32, #tpu.memory_space<smem>>
      memref.store %40, %arg3[%c0_14] : memref<1xf32, #tpu.memory_space<smem>>
    } else {
    }
    return
  }
  func.func @transform_0(%arg0: i32) -> (i32, i32) {
    %c0_i32 = arith.constant 0 : i32
    %c0_i32_0 = arith.constant 0 : i32
    return %arg0, %c0_i32 : i32, i32
  }
  func.func @transform_1(%arg0: i32) -> (i32, i32) {
    %c0_i32 = arith.constant 0 : i32
    %c0_i32_0 = arith.constant 0 : i32
    return %arg0, %c0_i32 : i32, i32
  }
  func.func @transform_2(%arg0: i32) -> i32 {
    %c0_i32 = arith.constant 0 : i32
    %c0_i32_0 = arith.constant 0 : i32
    return %c0_i32 : i32
  }
}

</mosaic_0001>

<llo_original>
// kernel: tpu_custom_call.1
$region0: #{tpu_custom_call.1}
  #allocation0 [shape = 'u32[]', space=smem, size = 0x4, offset = 0x4, fixed_abs, tag = 'smem constant byte address 0x4 - core index']
  #allocation1 [shape = 'u32[144,128]{1,0:T(1,128)}', space=vmem, size = 0x12000, scoped, tag = 'internal scratch']
  %s0 = inlined_call_operand.vmem [shape: f32[21,16], index: 0, kind: input, shape index: {}]
  %s1 = inlined_call_operand.vmem [shape: s32[21,1], index: 1, kind: input, shape index: {}]
  %s2 = inlined_call_operand.hbm [shape: f32[1], index: 2, kind: output, shape index: {}]
  %s3 = sld [smem:[#allocation0]]
  $region49: #{tpu_custom_call.1} parent=0
    _
  %s5 = ssub.s32 1, %s3
  %s6 = scalar_select 0, %s5, %s3
  $region1: #{tpu_custom_call.1} parent=0
    #allocation2 [shape = 'u8[512]{0}', space=smem, size = 0x200, scoped, tag = 'output window, operand 0, single buffered']
    #allocation3 [shape = 's32[2]{0}', space=sflag, size = 0x8, scoped, tag = 'scoped memory for tpu_custom_call.1']
    %7 = vsyncpa [#allocation3], 0
    loop: start=0, step=1, limit=5
    $region2: #{tpu_custom_call.1} parent=1 // loop_pre_header
      _
    $region3: #{tpu_custom_call.1} parent=1 // loop_header
      %s9 = sphi 0, %s13
      %p10 = scmp.ge.s32.totalorder %s9, 5
      %s19 = sphi 0, %s21
      %s22 = sphi 0, %s19
      %s23 = sphi 0, %s22
      %s39 = sphi 0, %s23
      %s45 = sphi 0, %s47
      %s48 = sphi 0, %s45
      %s49 = sphi 0, %s48
      %s65 = sphi 0, %s49
      %s69 = sphi 0, %s69
      %s71 = sphi 0, %s69
      %s72 = sphi 0, %s71
      %s86 = sphi 0, %s72
    $region4: #{tpu_custom_call.1} parent=1 // loop_header_branch
      %12 = sbr.rel (%p10) target = $region8
    $region5: #{tpu_custom_call.1} parent=1 // loop_body
      %s14 = ssub.s32 %s9, 1
      %s15 = ssub.s32 %s9, 2
      %s16 = sadd.s32 %s9, 1
      %s17 = ssub.s32 %s9, %s16
      %p18 = scmp.eq.s32.totalorder %s17, 0
      %s20 = sadd.s32 %s19, 1
      %s21 = scalar_select %p18, %s19, %s20
      %p24 = pneg %p18
      %p25 = scmp.eq.s32.totalorder %s9, 2
      %p26 = por %p24, %p25
      %p27 = scmp.ne.s32.totalorder %s19, %s22
      %p28 = scmp.eq.s32.totalorder %s9, 0
      %p29 = por %p27, %p28
      %p30 = scmp.ne.s32.totalorder %s19, %s22
      %p31 = scmp.eq.s32.totalorder %s14, 2
      %p32 = por %p30, %p31
      %p33 = scmp.ne.s32.totalorder %s22, %s23
      %p34 = scmp.eq.s32.totalorder %s14, 0
      %p35 = por %p33, %p34
      %p36 = scmp.ne.s32.totalorder %s22, %s23
      %p37 = scmp.eq.s32.totalorder %s15, 2
      %p38 = por %p36, %p37
      %p40 = scmp.ne.s32.totalorder %s23, %s39
      %p41 = scmp.eq.s32.totalorder %s15, 0
      %p42 = por %p40, %p41
      %s43 = ssub.s32 %s9, %s16
      %p44 = scmp.eq.s32.totalorder %s43, 0
      %s46 = sadd.s32 %s45, 1
      %s47 = scalar_select %p44, %s45, %s46
      %p50 = pneg %p44
      %p51 = scmp.eq.s32.totalorder %s9, 2
      %p52 = por %p50, %p51
      %p53 = scmp.ne.s32.totalorder %s45, %s48
      %p54 = scmp.eq.s32.totalorder %s9, 0
      %p55 = por %p53, %p54
      %p56 = scmp.ne.s32.totalorder %s45, %s48
      %p57 = scmp.eq.s32.totalorder %s14, 2
      %p58 = por %p56, %p57
      %p59 = scmp.ne.s32.totalorder %s48, %s49
      %p60 = scmp.eq.s32.totalorder %s14, 0
      %p61 = por %p59, %p60
      %p62 = scmp.ne.s32.totalorder %s48, %s49
      %p63 = scmp.eq.s32.totalorder %s15, 2
      %p64 = por %p62, %p63
      %p66 = scmp.ne.s32.totalorder %s49, %s65
      %p67 = scmp.eq.s32.totalorder %s15, 0
      %p68 = por %p66, %p67
      %s70 = sadd.s32 %s69, 1
      %p73 = scmp.eq.s32.totalorder %s9, 2
      %p74 = scmp.ne.s32.totalorder %s69, %s71
      %p75 = scmp.eq.s32.totalorder %s9, 0
      %p76 = por %p74, %p75
      %p77 = scmp.ne.s32.totalorder %s69, %s71
      %p78 = scmp.eq.s32.totalorder %s14, 2
      %p79 = por %p77, %p78
      %p80 = scmp.ne.s32.totalorder %s71, %s72
      %p81 = scmp.eq.s32.totalorder %s14, 0
      %p82 = por %p80, %p81
      %p83 = scmp.ne.s32.totalorder %s71, %s72
      %p84 = scmp.eq.s32.totalorder %s15, 2
      %p85 = por %p83, %p84
      %p87 = scmp.ne.s32.totalorder %s72, %s86
      %p88 = scmp.eq.s32.totalorder %s15, 0
      %p89 = por %p87, %p88
      %p90 = scmp.le.s32.totalorder 1, %s9
      %p91 = scmp.lt.s32.totalorder %s9, 4
      %p92 = pnand %p90, %p91
      %p93 = pneg %p92
      // Predicated region
      $region9: #{tpu_custom_call.1} parent=5 // pred_check
        _
      $region10: #{tpu_custom_call.1} parent=5 // pred_check_branch
        %95 = sbr.rel (%p92) target = $region12
      $region11: #{tpu_custom_call.1} parent=5 // pred_region
        %s96 = ssub.s32 %s9, 1
      $region12: #{tpu_custom_call.1} parent=5 // pred_fallthru
        _
      %p97 = scmp.lt.s32.totalorder %s9, 3
      // Predicated region
      $region13: #{tpu_custom_call.1} parent=5 // pred_check
        %p98 = pneg %p97
      $region14: #{tpu_custom_call.1} parent=5 // pred_check_branch
        %100 = sbr.rel (%p98) target = $region16
      $region15: #{tpu_custom_call.1} parent=5 // pred_region
        // Predicated region
        $region17: #{tpu_custom_call.1} parent=15 // pred_check
          %p101 = pneg %p29
        $region18: #{tpu_custom_call.1} parent=15 // pred_check_branch
          %103 = sbr.rel (%p101) target = $region20
        $region19: #{tpu_custom_call.1} parent=15 // pred_region
          %p104 = scmp.lt.s32.totalorder %s9, 2
          %s105 = scalar_select %p104, %s9, 2
          %s106 = smul.addr %s105, 8
          %s107 = scalar_lea.vmem %s0, %s106
        $region20: #{tpu_custom_call.1} parent=15 // pred_fallthru
          _
        // Predicated region
        $region21: #{tpu_custom_call.1} parent=15 // pred_check
          %p108 = pneg %p55
        $region22: #{tpu_custom_call.1} parent=15 // pred_check_branch
          %110 = sbr.rel (%p108) target = $region24
        $region23: #{tpu_custom_call.1} parent=15 // pred_region
          %p111 = scmp.lt.s32.totalorder %s9, 2
          %s112 = scalar_select %p111, %s9, 2
          %s113 = smul.addr %s112, 8
          %s114 = scalar_lea.vmem %s1, %s113
        $region24: #{tpu_custom_call.1} parent=15 // pred_fallthru
          _
      $region16: #{tpu_custom_call.1} parent=5 // pred_fallthru
        _
      %p115 = scmp.le.s32.totalorder 1, %s9
      %p116 = scmp.lt.s32.totalorder %s9, 4
      %p117 = pnand %p115, %p116
      %p118 = pneg %p117
      // Predicated region
      $region25: #{tpu_custom_call.1} parent=5 // pred_check
        _
      $region26: #{tpu_custom_call.1} parent=5 // pred_check_branch
        %120 = sbr.rel (%p117) target = $region28
      $region27: #{tpu_custom_call.1} parent=5 // pred_region
        %s121 = ssub.s32 %s9, 1
        %p122 = scmp.lt.s32.totalorder %s14, 2
        %s123 = scalar_select %p122, %s14, 2
        %s124 = smul.addr %s123, 8
        %s125 = scalar_lea.vmem %s0, %s124
        %p126 = pneg %p35
        %p127 = pneg %p32
        %p128 = scmp.lt.s32.totalorder %s14, 2
        %s129 = scalar_select %p128, %s14, 2
        %s130 = smul.addr %s129, 8
        %s131 = scalar_lea.vmem %s1, %s130
        %p132 = pneg %p61
        %p133 = pneg %p58
        %p134 = pneg %p82
        %p135 = pneg %p79
        %p136 = scmp.lt.s32.totalorder %s14, 2
        %s137 = scalar_select %p136, %s14, 2
        %s138 = smul.addr %s137, 8
        %s139 = scalar_lea.vmem %s0, %s138
        %p140 = scmp.lt.s32.totalorder %s14, 2
        %s141 = scalar_select %p140, %s14, 2
        %s142 = smul.addr %s141, 8
        %s143 = scalar_lea.vmem %s1, %s142
        %v144 = vld [vmem:[%s139] sm:$0xff]
        %v145 = vld [vmem:[%s143] sm:$0xff]
        %vm146 = vcmask 130048
        %v147 = vsel %vm146, %v144, -inf
        %148 = vmax.xlane.f32.xlu0 %v147
        %v149 = vpop.xlane.xlu0 %148
        %v150 = vsub.f32 %v144, %v149
        %v151 = vmul.f32 %v150, 1.442695
        %v152 = vpow.pop %v151
        %v153 = vsel %vm146, %v152, 0.0
        %154 = vadd.xlane.f32.xlu0 %v153
        %v155 = vpop.xlane.xlu0 %154
        %v156 = vlog2.pop %v155
        %v157 = vmul.f32 %v156, 0.6931472
        %v158 = vlaneseq
        %v159 = vand.u32 %v158, 127
        %160 = vset.pattern.permute.xlu0 0
        %161 = vperm.xlu0 %160, %v145
        %v162 = vpop.permute.xlu0 %161
        %vm163 = vcmp.eq.s32.totalorder %v159, %v162
        %v164 = vsel %vm163, %v150, 0.0
        %v165 = vsel %vm146, %v164, 0.0
        %166 = vadd.xlane.f32.xlu0 %v165
        %v167 = vpop.xlane.xlu0 %166
        %v168 = vsub.f32 %v157, %v167
        %v169 = vlaneseq
        %v170 = vshrl.u32 %v169, 7
        %s171 = smul.u32 %s14, 8
        %v172 = vstv %s171
        %v173 = vadd.s32 %v170, %v172
        %vm174 = vcmp.lt.s32.totalorder %v173, 21
        %v175 = vsel %vm174, %v168, 0.0
        %vm176 = vcmask 7168
        %v177 = vsel %vm176, %v175, 0.0
        %178 = vadd.xlane.f32.xlu0 %v177
        %v179 = vpop.xlane.xlu0 %178
        %v180 = vrot.slane %v179, 4
        %v181 = vadd.f32 %v179, %v180
        %v182 = vrot.slane %v181, 2
        %v183 = vadd.f32 %v181, %v182
        %v184 = vrot.slane %v183, 1
        %v185 = vadd.f32 %v183, %v184
        %s186 = vtos %v185
        %p187 = scmp.eq.s32.totalorder %s14, 0
        // Predicated region
        $region29: #{tpu_custom_call.1} parent=27 // pred_check
          %p188 = pneg %p187
        $region30: #{tpu_custom_call.1} parent=27 // pred_check_branch
          %190 = sbr.rel (%p188) target = $region32
        $region31: #{tpu_custom_call.1} parent=27 // pred_region
          %s191 = scalar_lea.smem [#allocation2], 0
          %192 = sst [smem:[%s191]] 0.0
        $region32: #{tpu_custom_call.1} parent=27 // pred_fallthru
          _
        %s193 = sld [smem:[#allocation2]]
        %s194 = sadd.f32 %s193, %s186
        %s195 = scalar_lea.smem [#allocation2], 0
        %196 = sst [smem:[%s195]] %s194
        %p197 = scmp.eq.s32.totalorder %s14, 2
        // Predicated region
        $region33: #{tpu_custom_call.1} parent=27 // pred_check
          %p198 = pneg %p197
        $region34: #{tpu_custom_call.1} parent=27 // pred_check_branch
          %200 = sbr.rel (%p198) target = $region36
        $region35: #{tpu_custom_call.1} parent=27 // pred_region
          %s201 = sld [smem:[#allocation2]]
          %s202 = smul.f32 %s201, 0.04761905
          %203 = sst [smem:[%s195]] %s202
        $region36: #{tpu_custom_call.1} parent=27 // pred_fallthru
          _
        // Predicated region
        $region37: #{tpu_custom_call.1} parent=27 // pred_check
          %p204 = pneg %p79
        $region38: #{tpu_custom_call.1} parent=27 // pred_check_branch
          %206 = sbr.rel (%p204) target = $region40
        $region39: #{tpu_custom_call.1} parent=27 // pred_region
          %s208 = ssub.s32 16, 16
          %209 = vsyncadd [#allocation3], %s208
          %212 = dma.smem_to_hbm [#allocation2], 16, %s2, [#allocation3]
        $region40: #{tpu_custom_call.1} parent=27 // pred_fallthru
          _
        // Predicated region
        $region41: #{tpu_custom_call.1} parent=27 // pred_check
          %p213 = pneg %p79
        $region42: #{tpu_custom_call.1} parent=27 // pred_check_branch
          %215 = sbr.rel (%p213) target = $region44
        $region43: #{tpu_custom_call.1} parent=27 // pred_region
          %216 = dma.done [#allocation3], 16
        $region44: #{tpu_custom_call.1} parent=27 // pred_fallthru
          _
        %217 = sfence
      $region28: #{tpu_custom_call.1} parent=5 // pred_fallthru
        _
      %p218 = scmp.le.s32.totalorder 2, %s9
      // Predicated region
      $region45: #{tpu_custom_call.1} parent=5 // pred_check
        %p219 = pneg %p218
      $region46: #{tpu_custom_call.1} parent=5 // pred_check_branch
        %221 = sbr.rel (%p219) target = $region48
      $region47: #{tpu_custom_call.1} parent=5 // pred_region
        %s222 = ssub.s32 %s9, 2
      $region48: #{tpu_custom_call.1} parent=5 // pred_fallthru
        _
    $region6: #{tpu_custom_call.1} parent=1 // loop_footer
      %s13 = sadd.s32 1, %s9
    $region7: #{tpu_custom_call.1} parent=1 // loop_footer_branch
      %8 = sbr.rel target = $region3
    $region8: #{tpu_custom_call.1} parent=1 // loop_exit
      _
    %223 = vsyncpa [#allocation3], 1
    %s224 = scalar_lea.sflag [#allocation3], 1
    %225 = vsyncpa %s224, 1

</llo_original>
